<compile_context>
chip_gen: v5e
topology: v5e:2x2
jax: 0.10.0
libtpu: 0.0.40
codegen_flags: <defaults>
</compile_context>

<pallas_src>
import functools

import jax
import jax.numpy as jnp
from jax.experimental import pallas as pl
from jax.experimental.pallas import tpu as pltpu

_LANE = 128
_SUBLANE = 8
_MAX_TILE_B = 1024  # (tile, 768) bf16 out tile ~1.5 MiB double-buffered; total
                    # footprint stays well under v5e's 16 MiB scoped default.


def _round_up(v, m):
    return ((v + m - 1) // m) * m


def _mlp_kernel(x_ref, w1_ref, b1_ref, w2_ref, b2_ref, o_ref, *, compute_dtype):
    # x: (TB, D), w1: (D, Hp), b1: (1, Hp), w2: (Hp, OUT), b2: (1, OUT)
    x = x_ref[...].astype(compute_dtype)          # no-op if caller passes bf16 x
    h = jnp.dot(x, w1_ref[...], preferred_element_type=jnp.float32) + b1_ref[...]
    h = jnp.maximum(h, 0.0)                       # ReLU + bias stay f32 (VPU)
    y = jnp.dot(h.astype(compute_dtype), w2_ref[...],
                preferred_element_type=jnp.float32) + b2_ref[...]
    o_ref[...] = y.astype(o_ref.dtype)


def prepare_params(w1, b1, w2, b2, *, compute_dtype=jnp.bfloat16):
    """One-time weight prep: transpose to (in, out), pad hidden dim to 128 lanes,
    cast matmul operands to bf16.  Padding is numerically exact: the padded w1
    columns / b1 tail / w2 rows are zero, and ReLU(0) = 0.

    PyTorch nn.Linear layout expected: w1 (H, D), b1 (H,), w2 (OUT, H), b2 (OUT,).
    """
    H, D = w1.shape
    OUT = w2.shape[0]
    Hp = max(_LANE, _round_up(H, _LANE))
    w1_t = jnp.zeros((D, Hp), compute_dtype).at[:, :H].set(w1.T.astype(compute_dtype))
    b1_p = jnp.zeros((1, Hp), jnp.float32).at[:, :H].set(b1.astype(jnp.float32))
    w2_t = jnp.zeros((Hp, OUT), compute_dtype).at[:H, :].set(w2.T.astype(compute_dtype))
    b2_p = b2.reshape(1, OUT).astype(jnp.float32)
    return (w1_t, b1_p, w2_t, b2_p)


def manipulador_latente_forward(x, params, *, tile_b=None, out_dtype=jnp.bfloat16):
    """Forward pass of ManipuladorLatente.

    x      : (B, D) float32 or bfloat16 (bf16 input halves the x HBM read).
    params : output of prepare_params().
    out_dtype defaults to bf16 (kernel is HBM-bound; the 768-wide output is the
    dominant traffic).  Pass jnp.float32 if the consumer needs full precision.
    """
    w1_t, b1_p, w2_t, b2_p = params
    B, D = x.shape
    Hp, OUT = w2_t.shape
    compute_dtype = w1_t.dtype

    # --- batch tiling: balanced tiles, >=2 (even) grid steps so both v7x
    #     TensorCores are fed and the pipeline overlaps DMA with compute;
    #     capped at 1024 rows so it fits every generation's scoped VMEM. ---
    if tile_b is None:
        n_steps = _round_up(max(2, pl.cdiv(B, _MAX_TILE_B)), 2)
        tile_b = _round_up(pl.cdiv(B, n_steps), _SUBLANE)
    tile_b = max(_SUBLANE, min(_round_up(tile_b, _SUBLANE), _MAX_TILE_B))
    tile_b = min(tile_b, _round_up(B, _SUBLANE))

    grid = (pl.cdiv(B, tile_b),)   # ragged last block handled by Pallas masking

    flops = 2 * B * (D * Hp + Hp * OUT)
    bytes_accessed = (
        x.size * x.dtype.itemsize
        + w1_t.size * w1_t.dtype.itemsize + w2_t.size * w2_t.dtype.itemsize
        + b1_p.size * 4 + b2_p.size * 4
        + B * OUT * jnp.dtype(out_dtype).itemsize
    )

    kernel = functools.partial(_mlp_kernel, compute_dtype=compute_dtype)

    return pl.pallas_call(
        kernel,
        out_shape=jax.ShapeDtypeStruct((B, OUT), out_dtype),
        grid_spec=pltpu.PrefetchScalarGridSpec(
            num_scalar_prefetch=0,
            grid=grid,
            in_specs=[
                pl.BlockSpec((tile_b, D), lambda i: (i, 0)),   # x tile (pipelined)
                pl.BlockSpec((D, Hp), lambda i: (0, 0)),       # W1^T (resident)
                pl.BlockSpec((1, Hp), lambda i: (0, 0)),       # b1   (resident)
                pl.BlockSpec((Hp, OUT), lambda i: (0, 0)),     # W2^T (resident)
                pl.BlockSpec((1, OUT), lambda i: (0, 0)),      # b2   (resident)
            ],
            out_specs=pl.BlockSpec((tile_b, OUT), lambda i: (i, 0)),
        ),
        compiler_params=pltpu.CompilerParams(
            dimension_semantics=("parallel",)),
        cost_estimate=pl.CostEstimate(
            flops=flops, transcendentals=0, bytes_accessed=bytes_accessed),
    )(x, w1_t, b1_p, w2_t, b2_p)


if __name__ == "__main__":
    # Small shapes consistent with the module: input_dim=32, hidden=64, output_dim=768.
    # NOTE: at this size the Pallas path is overhead-dominated; it exists for large B.
    B, D, OUT = 8, 32, 768
    H = D * 2

    key = jax.random.PRNGKey(0)
    kx, kw1, kb1, kw2, kb2 = jax.random.split(key, 5)

    x = jax.random.normal(kx, (B, D), dtype=jnp.float32)

    # PyTorch nn.Linear stores weight as (out, in); prepare_params handles it.
    w1 = jax.random.normal(kw1, (H, D), dtype=jnp.float32) * 0.02   # Linear(D, 2D).weight
    b1 = jax.random.normal(kb1, (H,), dtype=jnp.float32) * 0.02     # Linear(D, 2D).bias
    w2 = jax.random.normal(kw2, (OUT, H), dtype=jnp.float32) * 0.02 # Linear(2D, OUT).weight
    b2 = jax.random.normal(kb2, (OUT,), dtype=jnp.float32) * 0.02   # Linear(2D, OUT).bias

    params = prepare_params(w1, b1, w2, b2)          # one-time prep, hoisted
    y = manipulador_latente_forward(x, params)       # bf16 output by default
    y = jax.block_until_ready(y)

    # Pure-JAX f32 reference (same semantics as the PyTorch forward).
    ref = jnp.maximum(x @ w1.T + b1, 0.0) @ w2.T + b2
    assert y.shape == (B, OUT)
    assert y.dtype == jnp.bfloat16
    # bf16 matmul operands + bf16 output vs f32 reference -> loose tolerance.
    assert jnp.allclose(y.astype(jnp.float32), ref, atol=2e-2, rtol=2e-2)

    # Also exercise the f32 opt-out path once.
    y32 = jax.block_until_ready(
        manipulador_latente_forward(x, params, out_dtype=jnp.float32))
    assert y32.dtype == jnp.float32
    assert jnp.allclose(y32, ref, atol=2e-2, rtol=2e-2)

    print("KERNEL_OK")
</pallas_src>

<mosaic_0001>
module attributes {stable_mosaic.version = 11 : i64} {
  func.func @_mlp_kernel(%arg0: i32, %arg1: memref<8x32xf32, #tpu.memory_space<vmem>>, %arg2: memref<32x128xbf16, #tpu.memory_space<vmem>>, %arg3: memref<1x128xf32, #tpu.memory_space<vmem>>, %arg4: memref<128x768xbf16, #tpu.memory_space<vmem>>, %arg5: memref<1x768xf32, #tpu.memory_space<vmem>>, %arg6: memref<8x768xbf16, #tpu.memory_space<vmem>>) attributes {dimension_semantics = [#tpu.dimension_semantics<parallel>], iteration_bounds = array<i64: 1>, scalar_prefetch = 0 : i64, scratch_operands = 0 : i64, tpu.core_type = #tpu.core_type<tc>, window_params = [{transform_indices = @transform_0, window_bounds = array<i64: 8, 32>}, {pipeline_mode = #tpu.pipeline_mode<synchronous>, transform_indices = @transform_1, window_bounds = array<i64: 32, 128>}, {pipeline_mode = #tpu.pipeline_mode<synchronous>, transform_indices = @transform_2, window_bounds = array<i64: 1, 128>}, {pipeline_mode = #tpu.pipeline_mode<synchronous>, transform_indices = @transform_3, window_bounds = array<i64: 128, 768>}, {pipeline_mode = #tpu.pipeline_mode<synchronous>, transform_indices = @transform_4, window_bounds = array<i64: 1, 768>}, {transform_indices = @transform_5, window_bounds = array<i64: 8, 768>}]} {
    %c0 = arith.constant 0 : index
    %c0_0 = arith.constant 0 : index
    %0 = vector.load %arg1[%c0, %c0_0] : memref<8x32xf32, #tpu.memory_space<vmem>>, vector<8x32xf32>
    %1 = arith.truncf %0 : vector<8x32xf32> to vector<8x32xbf16>
    %c0_1 = arith.constant 0 : index
    %c0_2 = arith.constant 0 : index
    %2 = vector.load %arg2[%c0_1, %c0_2] : memref<32x128xbf16, #tpu.memory_space<vmem>>, vector<32x128xbf16>
    %cst = arith.constant dense<0.000000e+00> : vector<8x128xf32>
    %3 = tpu.matmul %1, %2, %cst {dimension_numbers = #tpu.dot_dimension_numbers<[1], [0], [0], [1], [0, 0, 1, 1], [], []>} : vector<8x32xbf16>, vector<32x128xbf16>, vector<8x128xf32> -> vector<8x128xf32>
    %c0_3 = arith.constant 0 : index
    %c0_4 = arith.constant 0 : index
    %4 = vector.load %arg3[%c0_3, %c0_4] : memref<1x128xf32, #tpu.memory_space<vmem>>, vector<1x128xf32>
    %5 = vector.broadcast %4 : vector<1x128xf32> to vector<8x128xf32>
    %6 = arith.addf %3, %5 : vector<8x128xf32>
    %cst_5 = arith.constant 0.000000e+00 : f32
    %7 = vector.broadcast %cst_5 : f32 to vector<8x128xf32>
    %8 = arith.maximumf %6, %7 : vector<8x128xf32>
    %9 = arith.truncf %8 : vector<8x128xf32> to vector<8x128xbf16>
    %c0_6 = arith.constant 0 : index
    %c0_7 = arith.constant 0 : index
    %10 = vector.load %arg4[%c0_6, %c0_7] : memref<128x768xbf16, #tpu.memory_space<vmem>>, vector<128x768xbf16>
    %cst_8 = arith.constant dense<0.000000e+00> : vector<8x768xf32>
    %11 = tpu.matmul %9, %10, %cst_8 {dimension_numbers = #tpu.dot_dimension_numbers<[1], [0], [0], [1], [0, 0, 1, 1], [], []>} : vector<8x128xbf16>, vector<128x768xbf16>, vector<8x768xf32> -> vector<8x768xf32>
    %c0_9 = arith.constant 0 : index
    %c0_10 = arith.constant 0 : index
    %12 = vector.load %arg5[%c0_9, %c0_10] : memref<1x768xf32, #tpu.memory_space<vmem>>, vector<1x768xf32>
    %13 = vector.broadcast %12 : vector<1x768xf32> to vector<8x768xf32>
    %14 = arith.addf %11, %13 : vector<8x768xf32>
    %15 = arith.truncf %14 : vector<8x768xf32> to vector<8x768xbf16>
    %c0_11 = arith.constant 0 : index
    %c0_12 = arith.constant 0 : index
    %16 = vector.load %arg6[%c0_11, %c0_12] : memref<8x768xbf16, #tpu.memory_space<vmem>>, vector<8x768xbf16>
    tpu.vector_store %arg6[%c0_11, %c0_12], %15 {strides = array<i32>} : memref<8x768xbf16, #tpu.memory_space<vmem>>, vector<8x768xbf16>,
    return
  }
  func.func @transform_0(%arg0: i32) -> (i32, i32) {
    %c0_i32 = arith.constant 0 : i32
    %c0_i32_0 = arith.constant 0 : i32
    return %arg0, %c0_i32 : i32, i32
  }
  func.func @transform_1(%arg0: i32) -> (i32, i32) {
    %c0_i32 = arith.constant 0 : i32
    %c0_i32_0 = arith.constant 0 : i32
    %c0_i32_1 = arith.constant 0 : i32
    return %c0_i32, %c0_i32_0 : i32, i32
  }
  func.func @transform_2(%arg0: i32) -> (i32, i32) {
    %c0_i32 = arith.constant 0 : i32
    %c0_i32_0 = arith.constant 0 : i32
    %c0_i32_1 = arith.constant 0 : i32
    return %c0_i32, %c0_i32_0 : i32, i32
  }
  func.func @transform_3(%arg0: i32) -> (i32, i32) {
    %c0_i32 = arith.constant 0 : i32
    %c0_i32_0 = arith.constant 0 : i32
    %c0_i32_1 = arith.constant 0 : i32
    return %c0_i32, %c0_i32_0 : i32, i32
  }
  func.func @transform_4(%arg0: i32) -> (i32, i32) {
    %c0_i32 = arith.constant 0 : i32
    %c0_i32_0 = arith.constant 0 : i32
    %c0_i32_1 = arith.constant 0 : i32
    return %c0_i32, %c0_i32_0 : i32, i32
  }
  func.func @transform_5(%arg0: i32) -> (i32, i32) {
    %c0_i32 = arith.constant 0 : i32
    %c0_i32_0 = arith.constant 0 : i32
    return %arg0, %c0_i32 : i32, i32
  }
}

</mosaic_0001>

<llo_original>
// kernel: tpu_custom_call.1
$region0: #{tpu_custom_call.1}
  #allocation0 [shape = 'u32[]', space=smem, size = 0x4, offset = 0x4, fixed_abs, tag = 'smem constant byte address 0x4 - core index']
  #allocation1 [shape = 'u32[72,128]{1,0:T(1,128)}', space=vmem, size = 0x9000, scoped, tag = 'internal scratch']
  %s0 = inlined_call_operand.hbm [shape: f32[8,32], index: 0, kind: input, shape index: {}]
  %s1 = inlined_call_operand.hbm [shape: bf16[32,128], index: 1, kind: input, shape index: {}]
  %s2 = inlined_call_operand.vmem [shape: f32[1,128], index: 2, kind: input, shape index: {}]
  %s3 = inlined_call_operand.hbm [shape: bf16[128,768], index: 3, kind: input, shape index: {}]
  %s4 = inlined_call_operand.hbm [shape: f32[1,768], index: 4, kind: input, shape index: {}]
  %s5 = inlined_call_operand.hbm [shape: bf16[8,768], index: 5, kind: output, shape index: {}]
  %s6 = sld [smem:[#allocation0]]
  $region46: #{tpu_custom_call.1} parent=0
    _
  %s8 = ssub.s32 1, %s6
  %s9 = scalar_select 0, %s8, %s6
  $region1: #{tpu_custom_call.1} parent=0
    #allocation2 [shape = 'u8[4096]{0}', space=vmem, size = 0x1000, scoped, tag = 'input window, operand 0, single buffered']
    #allocation3 [shape = 's32[1]{0}', space=sflag, size = 0x4, scoped, tag = 'scoped memory for tpu_custom_call.1']
    #allocation4 [shape = 's32[1]{0}', space=sflag, size = 0x4, scoped, tag = 'scoped memory for tpu_custom_call.1']
    #allocation5 [shape = 'u8[8192]{0}', space=vmem, size = 0x2000, scoped, tag = 'input window, operand 1, single buffered']
    #allocation6 [shape = 's32[1]{0}', space=sflag, size = 0x4, scoped, tag = 'scoped memory for tpu_custom_call.1']
    #allocation7 [shape = 'u8[196608]{0}', space=vmem, size = 0x30000, scoped, tag = 'input window, operand 3, single buffered']
    #allocation8 [shape = 'u8[3072]{0}', space=vmem, size = 0xc00, scoped, tag = 'input window, operand 4, single buffered']
    #allocation9 [shape = 's32[1]{0}', space=sflag, size = 0x4, scoped, tag = 'scoped memory for tpu_custom_call.1']
    #allocation10 [shape = 'u8[12288]{0}', space=vmem, size = 0x3000, scoped, tag = 'output window, operand 0, single buffered']
    %10 = vsyncpa [#allocation3], 0
    %11 = vsyncpa [#allocation6], 0
    %12 = vsyncpa [#allocation9], 0
    %13 = vsyncpa [#allocation4], 0
    // Predicated region
    $region2: #{tpu_custom_call.1} parent=1 // pred_check
      _
    $region3: #{tpu_custom_call.1} parent=1 // pred_check_branch
      %15 = sbr.rel (0) target = $region5
    $region4: #{tpu_custom_call.1} parent=1 // pred_region
      %17 = vsyncadd [#allocation3], 0
      %s19 = sshll.u32 %s0, 4
      %s20 = int_to_ptr.hbm [resolvable:$true] %s19
      %s21 = sshll.u32 [#allocation2], 4
      %s22 = int_to_ptr.vmem [resolvable:$true] %s21
      %24 = dma.hbm_to_vmem [thread:$0]  %s20, 128, %s22, [#allocation3]
    $region5: #{tpu_custom_call.1} parent=1 // pred_fallthru
      _
    // Predicated region
    $region6: #{tpu_custom_call.1} parent=1 // pred_check
      _
    $region7: #{tpu_custom_call.1} parent=1 // pred_check_branch
      %26 = sbr.rel (0) target = $region9
    $region8: #{tpu_custom_call.1} parent=1 // pred_region
      %28 = vsyncadd [#allocation6], 0
      %s29 = sshll.u32 %s1, 4
      %s30 = int_to_ptr.hbm [resolvable:$true] %s29
      %s31 = sshll.u32 [#allocation5], 4
      %s32 = int_to_ptr.vmem [resolvable:$true] %s31
      %37 = dma.hbm_to_vmem [thread:$0]  %s30, 256, %s32, [#allocation6], 64, 64, 4
    $region9: #{tpu_custom_call.1} parent=1 // pred_fallthru
      _
    // Predicated region
    $region10: #{tpu_custom_call.1} parent=1 // pred_check
      _
    $region11: #{tpu_custom_call.1} parent=1 // pred_check_branch
      %39 = sbr.rel (0) target = $region13
    $region12: #{tpu_custom_call.1} parent=1 // pred_region
      _
    $region13: #{tpu_custom_call.1} parent=1 // pred_fallthru
      _
    // Predicated region
    $region14: #{tpu_custom_call.1} parent=1 // pred_check
      _
    $region15: #{tpu_custom_call.1} parent=1 // pred_check_branch
      %41 = sbr.rel (0) target = $region17
    $region16: #{tpu_custom_call.1} parent=1 // pred_region
      %43 = vsyncadd [#allocation6], 0
      %s44 = sshll.u32 %s3, 4
      %s45 = int_to_ptr.hbm [resolvable:$true] %s44
      %s46 = sshll.u32 [#allocation7], 4
      %s47 = int_to_ptr.vmem [resolvable:$true] %s46
      %52 = dma.hbm_to_vmem [thread:$0]  %s45, 6144, %s47, [#allocation6], 384, 384, 24
    $region17: #{tpu_custom_call.1} parent=1 // pred_fallthru
      _
    // Predicated region
    $region18: #{tpu_custom_call.1} parent=1 // pred_check
      _
    $region19: #{tpu_custom_call.1} parent=1 // pred_check_branch
      %54 = sbr.rel (0) target = $region21
    $region20: #{tpu_custom_call.1} parent=1 // pred_region
      %56 = vsyncadd [#allocation9], 0
      %s58 = sshll.u32 %s4, 4
      %s59 = int_to_ptr.hbm [resolvable:$true] %s58
      %s60 = sshll.u32 [#allocation8], 4
      %s61 = int_to_ptr.vmem [resolvable:$true] %s60
      %63 = dma.hbm_to_vmem [thread:$0]  %s59, 96, %s61, [#allocation9]
    $region21: #{tpu_custom_call.1} parent=1 // pred_fallthru
      _
    // Predicated region
    $region22: #{tpu_custom_call.1} parent=1 // pred_check
      _
    $region23: #{tpu_custom_call.1} parent=1 // pred_check_branch
      %65 = sbr.rel (0) target = $region25
    $region24: #{tpu_custom_call.1} parent=1 // pred_region
      %67 = dma.done [#allocation3], 128
    $region25: #{tpu_custom_call.1} parent=1 // pred_fallthru
      _
    // Predicated region
    $region26: #{tpu_custom_call.1} parent=1 // pred_check
      _
    $region27: #{tpu_custom_call.1} parent=1 // pred_check_branch
      %69 = sbr.rel (0) target = $region29
    $region28: #{tpu_custom_call.1} parent=1 // pred_region
      %71 = dma.done [#allocation6], 256
    $region29: #{tpu_custom_call.1} parent=1 // pred_fallthru
      _
    // Predicated region
    $region30: #{tpu_custom_call.1} parent=1 // pred_check
      _
    $region31: #{tpu_custom_call.1} parent=1 // pred_check_branch
      %73 = sbr.rel (0) target = $region33
    $region32: #{tpu_custom_call.1} parent=1 // pred_region
      %75 = dma.done [#allocation6], 6144
    $region33: #{tpu_custom_call.1} parent=1 // pred_fallthru
      _
    // Predicated region
    $region34: #{tpu_custom_call.1} parent=1 // pred_check
      _
    $region35: #{tpu_custom_call.1} parent=1 // pred_check_branch
      %77 = sbr.rel (0) target = $region37
    $region36: #{tpu_custom_call.1} parent=1 // pred_region
      %79 = dma.done [#allocation9], 96
    $region37: #{tpu_custom_call.1} parent=1 // pred_fallthru
      _
    %v81 = vld [vmem:[#allocation2] sm:$0xff]
    %v82 = vpack.c.bf16 %v81, %v81
    %v83 = vld [vmem:[#allocation5] sm:$0xf]
    %v84 = vld [vmem:[#allocation5 + $0x4] sm:$0xf]
    %v85 = vld [vmem:[#allocation5 + $0x8] sm:$0xf]
    %v86 = vld [vmem:[#allocation5 + $0xc] sm:$0xf]
    %v87 = vld [vmem:[%s2] sm:$0x1]
    %v89 = vperm.slane %v87, 0
    %v95 = vunpack.c.l.b16 %v83
    %v96 = vunpack.c.l.b16 %v84
    %v97 = vunpack.c.l.b16 %v85
    %v98 = vunpack.c.l.b16 %v86
    %v99 = vpack.c.b16 %v96, %v95
    %v100 = vpack.c.b16 %v98, %v97
    %vm103 = vcmask 261120
    %v105 = vsel %vm103, %v82, 0
    %107 = vmatpush.bf16.msra.mxu0 0
    %108 = vmatpush.bf16.msra.mxu0 0
    %109 = vmatpush.bf16.msra.mxu0 0
    %110 = vmatpush.bf16.msra.mxu0 0
    %111 = vmatpush.bf16.msra.mxu0 0
    %112 = vmatpush.bf16.msra.mxu0 0
    %113 = vmatpush.bf16.msra.mxu0 %v100
    %114 = vmatpush.bf16.msra.mxu0 %v99
    %115 = vmatmul.bf16.gmra.mxu0 %v105
    %v116 = vpop.f32.mrf.mxu0
    %v117 = vadd.f32 %v89, %v116
    %v118 = vpop.f32.mrf.mxu0
    %119 = vdwg.mxu0
    %v120 = vmax.f32 %v117, 0.0
    %v121 = vpack.c.bf16 %v120, %v120
    %v122 = vld [vmem:[#allocation7] sm:$0xff]
    %v123 = vld [vmem:[#allocation7 + $0x8] sm:$0xff]
    %v124 = vld [vmem:[#allocation7 + $0x10] sm:$0xff]
    %v125 = vld [vmem:[#allocation7 + $0x18] sm:$0xff]
    %v126 = vld [vmem:[#allocation7 + $0x20] sm:$0xff]
    %v127 = vld [vmem:[#allocation7 + $0x28] sm:$0xff]
    %v128 = vld [vmem:[#allocation7 + $0x30] sm:$0xff]
    %v129 = vld [vmem:[#allocation7 + $0x38] sm:$0xff]
    %v130 = vld [vmem:[#allocation7 + $0x40] sm:$0xff]
    %v131 = vld [vmem:[#allocation7 + $0x48] sm:$0xff]
    %v132 = vld [vmem:[#allocation7 + $0x50] sm:$0xff]
    %v133 = vld [vmem:[#allocation7 + $0x58] sm:$0xff]
    %v134 = vld [vmem:[#allocation7 + $0x60] sm:$0xff]
    %v135 = vld [vmem:[#allocation7 + $0x68] sm:$0xff]
    %v136 = vld [vmem:[#allocation7 + $0x70] sm:$0xff]
    %v137 = vld [vmem:[#allocation7 + $0x78] sm:$0xff]
    %v138 = vld [vmem:[#allocation7 + $0x80] sm:$0xff]
    %v139 = vld [vmem:[#allocation7 + $0x88] sm:$0xff]
    %v140 = vld [vmem:[#allocation7 + $0x90] sm:$0xff]
    %v141 = vld [vmem:[#allocation7 + $0x98] sm:$0xff]
    %v142 = vld [vmem:[#allocation7 + $0xa0] sm:$0xff]
    %v143 = vld [vmem:[#allocation7 + $0xa8] sm:$0xff]
    %v144 = vld [vmem:[#allocation7 + $0xb0] sm:$0xff]
    %v145 = vld [vmem:[#allocation7 + $0xb8] sm:$0xff]
    %v146 = vld [vmem:[#allocation7 + $0xc0] sm:$0xff]
    %v147 = vld [vmem:[#allocation7 + $0xc8] sm:$0xff]
    %v148 = vld [vmem:[#allocation7 + $0xd0] sm:$0xff]
    %v149 = vld [vmem:[#allocation7 + $0xd8] sm:$0xff]
    %v150 = vld [vmem:[#allocation7 + $0xe0] sm:$0xff]
    %v151 = vld [vmem:[#allocation7 + $0xe8] sm:$0xff]
    %v152 = vld [vmem:[#allocation7 + $0xf0] sm:$0xff]
    %v153 = vld [vmem:[#allocation7 + $0xf8] sm:$0xff]
    %v154 = vld [vmem:[#allocation7 + $0x100] sm:$0xff]
    %v155 = vld [vmem:[#allocation7 + $0x108] sm:$0xff]
    %v156 = vld [vmem:[#allocation7 + $0x110] sm:$0xff]
    %v157 = vld [vmem:[#allocation7 + $0x118] sm:$0xff]
    %v158 = vld [vmem:[#allocation7 + $0x120] sm:$0xff]
    %v159 = vld [vmem:[#allocation7 + $0x128] sm:$0xff]
    %v160 = vld [vmem:[#allocation7 + $0x130] sm:$0xff]
    %v161 = vld [vmem:[#allocation7 + $0x138] sm:$0xff]
    %v162 = vld [vmem:[#allocation7 + $0x140] sm:$0xff]
    %v163 = vld [vmem:[#allocation7 + $0x148] sm:$0xff]
    %v164 = vld [vmem:[#allocation7 + $0x150] sm:$0xff]
    %v165 = vld [vmem:[#allocation7 + $0x158] sm:$0xff]
    %v166 = vld [vmem:[#allocation7 + $0x160] sm:$0xff]
    %v167 = vld [vmem:[#allocation7 + $0x168] sm:$0xff]
    %v168 = vld [vmem:[#allocation7 + $0x170] sm:$0xff]
    %v169 = vld [vmem:[#allocation7 + $0x178] sm:$0xff]
    %v170 = vld [vmem:[#allocation8] sm:$0x3f]
    %v172 = vperm.slane %v170, 0
    %v173 = vperm.slane %v170, 1
    %v174 = vperm.slane %v170, 2
    %v175 = vperm.slane %v170, 3
    %v176 = vperm.slane %v170, 4
    %v177 = vperm.slane %v170, 5
    %v232 = vunpack.c.l.b16 %v122
    %v233 = vunpack.c.h.b16 %v122
    %v234 = vunpack.c.l.b16 %v123
    %v235 = vunpack.c.h.b16 %v123
    %v236 = vunpack.c.l.b16 %v124
    %v237 = vunpack.c.h.b16 %v124
    %v238 = vunpack.c.l.b16 %v125
    %v239 = vunpack.c.h.b16 %v125
    %v240 = vunpack.c.l.b16 %v126
    %v241 = vunpack.c.h.b16 %v126
    %v242 = vunpack.c.l.b16 %v127
    %v243 = vunpack.c.h.b16 %v127
    %v244 = vunpack.c.l.b16 %v128
    %v245 = vunpack.c.h.b16 %v128
    %v246 = vunpack.c.l.b16 %v129
    %v247 = vunpack.c.h.b16 %v129
    %v248 = vunpack.c.l.b16 %v130
    %v249 = vunpack.c.h.b16 %v130
    %v250 = vunpack.c.l.b16 %v131
    %v251 = vunpack.c.h.b16 %v131
    %v252 = vunpack.c.l.b16 %v132
    %v253 = vunpack.c.h.b16 %v132
    %v254 = vunpack.c.l.b16 %v133
    %v255 = vunpack.c.h.b16 %v133
    %v256 = vunpack.c.l.b16 %v134
    %v257 = vunpack.c.h.b16 %v134
    %v258 = vunpack.c.l.b16 %v135
    %v259 = vunpack.c.h.b16 %v135
    %v260 = vunpack.c.l.b16 %v136
    %v261 = vunpack.c.h.b16 %v136
    %v262 = vunpack.c.l.b16 %v137
    %v263 = vunpack.c.h.b16 %v137
    %v264 = vunpack.c.l.b16 %v138
    %v265 = vunpack.c.h.b16 %v138
    %v266 = vunpack.c.l.b16 %v139
    %v267 = vunpack.c.h.b16 %v139
    %v268 = vunpack.c.l.b16 %v140
    %v269 = vunpack.c.h.b16 %v140
    %v270 = vunpack.c.l.b16 %v141
    %v271 = vunpack.c.h.b16 %v141
    %v272 = vunpack.c.l.b16 %v142
    %v273 = vunpack.c.h.b16 %v142
    %v274 = vunpack.c.l.b16 %v143
    %v275 = vunpack.c.h.b16 %v143
    %v276 = vunpack.c.l.b16 %v144
    %v277 = vunpack.c.h.b16 %v144
    %v278 = vunpack.c.l.b16 %v145
    %v279 = vunpack.c.h.b16 %v145
    %v280 = vunpack.c.l.b16 %v146
    %v281 = vunpack.c.h.b16 %v146
    %v282 = vunpack.c.l.b16 %v147
    %v283 = vunpack.c.h.b16 %v147
    %v284 = vunpack.c.l.b16 %v148
    %v285 = vunpack.c.h.b16 %v148
    %v286 = vunpack.c.l.b16 %v149
    %v287 = vunpack.c.h.b16 %v149
    %v288 = vunpack.c.l.b16 %v150
    %v289 = vunpack.c.h.b16 %v150
    %v290 = vunpack.c.l.b16 %v151
    %v291 = vunpack.c.h.b16 %v151
    %v292 = vunpack.c.l.b16 %v152
    %v293 = vunpack.c.h.b16 %v152
    %v294 = vunpack.c.l.b16 %v153
    %v295 = vunpack.c.h.b16 %v153
    %v296 = vunpack.c.l.b16 %v154
    %v297 = vunpack.c.h.b16 %v154
    %v298 = vunpack.c.l.b16 %v155
    %v299 = vunpack.c.h.b16 %v155
    %v300 = vunpack.c.l.b16 %v156
    %v301 = vunpack.c.h.b16 %v156
    %v302 = vunpack.c.l.b16 %v157
    %v303 = vunpack.c.h.b16 %v157
    %v304 = vunpack.c.l.b16 %v158
    %v305 = vunpack.c.h.b16 %v158
    %v306 = vunpack.c.l.b16 %v159
    %v307 = vunpack.c.h.b16 %v159
    %v308 = vunpack.c.l.b16 %v160
    %v309 = vunpack.c.h.b16 %v160
    %v310 = vunpack.c.l.b16 %v161
    %v311 = vunpack.c.h.b16 %v161
    %v312 = vunpack.c.l.b16 %v162
    %v313 = vunpack.c.h.b16 %v162
    %v314 = vunpack.c.l.b16 %v163
    %v315 = vunpack.c.h.b16 %v163
    %v316 = vunpack.c.l.b16 %v164
    %v317 = vunpack.c.h.b16 %v164
    %v318 = vunpack.c.l.b16 %v165
    %v319 = vunpack.c.h.b16 %v165
    %v320 = vunpack.c.l.b16 %v166
    %v321 = vunpack.c.h.b16 %v166
    %v322 = vunpack.c.l.b16 %v167
    %v323 = vunpack.c.h.b16 %v167
    %v324 = vunpack.c.l.b16 %v168
    %v325 = vunpack.c.h.b16 %v168
    %v326 = vunpack.c.l.b16 %v169
    %v327 = vunpack.c.h.b16 %v169
    %v328 = vpack.c.b16 %v238, %v232
    %v329 = vpack.c.b16 %v239, %v233
    %v330 = vpack.c.b16 %v240, %v234
    %v331 = vpack.c.b16 %v241, %v235
    %v332 = vpack.c.b16 %v242, %v236
    %v333 = vpack.c.b16 %v243, %v237
    %v334 = vpack.c.b16 %v250, %v244
    %v335 = vpack.c.b16 %v251, %v245
    %v336 = vpack.c.b16 %v252, %v246
    %v337 = vpack.c.b16 %v253, %v247
    %v338 = vpack.c.b16 %v254, %v248
    %v339 = vpack.c.b16 %v255, %v249
    %v340 = vpack.c.b16 %v262, %v256
    %v341 = vpack.c.b16 %v263, %v257
    %v342 = vpack.c.b16 %v264, %v258
    %v343 = vpack.c.b16 %v265, %v259
    %v344 = vpack.c.b16 %v266, %v260
    %v345 = vpack.c.b16 %v267, %v261
    %v346 = vpack.c.b16 %v274, %v268
    %v347 = vpack.c.b16 %v275, %v269
    %v348 = vpack.c.b16 %v276, %v270
    %v349 = vpack.c.b16 %v277, %v271
    %v350 = vpack.c.b16 %v278, %v272
    %v351 = vpack.c.b16 %v279, %v273
    %v352 = vpack.c.b16 %v286, %v280
    %v353 = vpack.c.b16 %v287, %v281
    %v354 = vpack.c.b16 %v288, %v282
    %v355 = vpack.c.b16 %v289, %v283
    %v356 = vpack.c.b16 %v290, %v284
    %v357 = vpack.c.b16 %v291, %v285
    %v358 = vpack.c.b16 %v298, %v292
    %v359 = vpack.c.b16 %v299, %v293
    %v360 = vpack.c.b16 %v300, %v294
    %v361 = vpack.c.b16 %v301, %v295
    %v362 = vpack.c.b16 %v302, %v296
    %v363 = vpack.c.b16 %v303, %v297
    %v364 = vpack.c.b16 %v310, %v304
    %v365 = vpack.c.b16 %v311, %v305
    %v366 = vpack.c.b16 %v312, %v306
    %v367 = vpack.c.b16 %v313, %v307
    %v368 = vpack.c.b16 %v314, %v308
    %v369 = vpack.c.b16 %v315, %v309
    %v370 = vpack.c.b16 %v322, %v316
    %v371 = vpack.c.b16 %v323, %v317
    %v372 = vpack.c.b16 %v324, %v318
    %v373 = vpack.c.b16 %v325, %v319
    %v374 = vpack.c.b16 %v326, %v320
    %v375 = vpack.c.b16 %v327, %v321
    %424 = vmatpush.bf16.msra.mxu0 %v370
    %425 = vmatpush.bf16.msra.mxu0 %v364
    %426 = vmatpush.bf16.msra.mxu0 %v358
    %427 = vmatpush.bf16.msra.mxu0 %v352
    %428 = vmatpush.bf16.msra.mxu0 %v346
    %429 = vmatpush.bf16.msra.mxu0 %v340
    %430 = vmatpush.bf16.msra.mxu0 %v334
    %431 = vmatpush.bf16.msra.mxu0 %v328
    %432 = vmatmul.bf16.gmra.mxu0 %v121
    %v433 = vpop.f32.mrf.mxu0
    %v434 = vadd.f32 %v172, %v433
    %v435 = vpop.f32.mrf.mxu0
    %436 = vdwg.mxu0
    %437 = vmatpush.bf16.msra.mxu0 %v371
    %438 = vmatpush.bf16.msra.mxu0 %v365
    %439 = vmatpush.bf16.msra.mxu0 %v359
    %440 = vmatpush.bf16.msra.mxu0 %v353
    %441 = vmatpush.bf16.msra.mxu0 %v347
    %442 = vmatpush.bf16.msra.mxu0 %v341
    %443 = vmatpush.bf16.msra.mxu0 %v335
    %444 = vmatpush.bf16.msra.mxu0 %v329
    %445 = vmatmul.bf16.gmra.mxu0 %v121
    %v446 = vpop.f32.mrf.mxu0
    %v447 = vadd.f32 %v173, %v446
    %v448 = vpop.f32.mrf.mxu0
    %449 = vdwg.mxu0
    %450 = vmatpush.bf16.msra.mxu0 %v372
    %451 = vmatpush.bf16.msra.mxu0 %v366
    %452 = vmatpush.bf16.msra.mxu0 %v360
    %453 = vmatpush.bf16.msra.mxu0 %v354
    %454 = vmatpush.bf16.msra.mxu0 %v348
    %455 = vmatpush.bf16.msra.mxu0 %v342
    %456 = vmatpush.bf16.msra.mxu0 %v336
    %457 = vmatpush.bf16.msra.mxu0 %v330
    %458 = vmatmul.bf16.gmra.mxu0 %v121
    %v459 = vpop.f32.mrf.mxu0
    %v460 = vadd.f32 %v174, %v459
    %v461 = vpop.f32.mrf.mxu0
    %462 = vdwg.mxu0
    %463 = vmatpush.bf16.msra.mxu0 %v373
    %464 = vmatpush.bf16.msra.mxu0 %v367
    %465 = vmatpush.bf16.msra.mxu0 %v361
    %466 = vmatpush.bf16.msra.mxu0 %v355
    %467 = vmatpush.bf16.msra.mxu0 %v349
    %468 = vmatpush.bf16.msra.mxu0 %v343
    %469 = vmatpush.bf16.msra.mxu0 %v337
    %470 = vmatpush.bf16.msra.mxu0 %v331
    %471 = vmatmul.bf16.gmra.mxu0 %v121
    %v472 = vpop.f32.mrf.mxu0
    %v473 = vadd.f32 %v175, %v472
    %v474 = vpop.f32.mrf.mxu0
    %475 = vdwg.mxu0
    %476 = vmatpush.bf16.msra.mxu0 %v374
    %477 = vmatpush.bf16.msra.mxu0 %v368
    %478 = vmatpush.bf16.msra.mxu0 %v362
    %479 = vmatpush.bf16.msra.mxu0 %v356
    %480 = vmatpush.bf16.msra.mxu0 %v350
    %481 = vmatpush.bf16.msra.mxu0 %v344
    %482 = vmatpush.bf16.msra.mxu0 %v338
    %483 = vmatpush.bf16.msra.mxu0 %v332
    %484 = vmatmul.bf16.gmra.mxu0 %v121
    %v485 = vpop.f32.mrf.mxu0
    %v486 = vadd.f32 %v176, %v485
    %v487 = vpop.f32.mrf.mxu0
    %488 = vdwg.mxu0
    %489 = vmatpush.bf16.msra.mxu0 %v375
    %490 = vmatpush.bf16.msra.mxu0 %v369
    %491 = vmatpush.bf16.msra.mxu0 %v363
    %492 = vmatpush.bf16.msra.mxu0 %v357
    %493 = vmatpush.bf16.msra.mxu0 %v351
    %494 = vmatpush.bf16.msra.mxu0 %v345
    %495 = vmatpush.bf16.msra.mxu0 %v339
    %496 = vmatpush.bf16.msra.mxu0 %v333
    %497 = vmatmul.bf16.gmra.mxu0 %v121
    %v498 = vpop.f32.mrf.mxu0
    %v499 = vadd.f32 %v177, %v498
    %v500 = vpop.f32.mrf.mxu0
    %501 = vdwg.mxu0
    %v502 = vpack.c.bf16 %v447, %v434
    %v503 = vpack.c.bf16 %v473, %v460
    %v504 = vpack.c.bf16 %v499, %v486
    %505 = vst [vmem:[#allocation10] sm:$0xff] %v502
    %506 = vst [vmem:[#allocation10 + $0x8] sm:$0xff] %v503
    %507 = vst [vmem:[#allocation10 + $0x10] sm:$0xff] %v504
    // Predicated region
    $region38: #{tpu_custom_call.1} parent=1 // pred_check
      _
    $region39: #{tpu_custom_call.1} parent=1 // pred_check_branch
      %509 = sbr.rel (0) target = $region41
    $region40: #{tpu_custom_call.1} parent=1 // pred_region
      %511 = vsyncadd [#allocation4], 0
      %s513 = sshll.u32 [#allocation10], 4
      %s514 = int_to_ptr.vmem [resolvable:$true] %s513
      %s515 = sshll.u32 %s5, 4
      %s516 = int_to_ptr.hbm [resolvable:$true] %s515
      %518 = dma.vmem_to_hbm [thread:$0]  %s514, 384, %s516, [#allocation4]
    $region41: #{tpu_custom_call.1} parent=1 // pred_fallthru
      _
    // Predicated region
    $region42: #{tpu_custom_call.1} parent=1 // pred_check
      _
    $region43: #{tpu_custom_call.1} parent=1 // pred_check_branch
      %520 = sbr.rel (0) target = $region45
    $region44: #{tpu_custom_call.1} parent=1 // pred_region
      %522 = dma.done [#allocation4], 384
    $region45: #{tpu_custom_call.1} parent=1 // pred_fallthru
      _
    %523 = vsyncpa [#allocation3], 1
    %524 = vsyncpa [#allocation6], 1
    %525 = vsyncpa [#allocation9], 1
    %526 = vsyncpa [#allocation4], 1

</llo_original>
